<compile_context>
chip_gen: v5e
topology: v5e:2x2
jax: 0.10.0
libtpu: 0.0.40
codegen_flags: <defaults>
</compile_context>

<pallas_src>
import functools

import jax
import jax.numpy as jnp
from jax.experimental import pallas as pl
from jax.experimental.pallas import tpu as pltpu


def _mlp_kernel(*refs, n_layers: int):
    """Fused MLP: refs = (x, w1, b1, w2, b2, ..., wL, bL, out).

    Weights are pre-transposed to (in_features, out_features) bf16; biases are
    (1, out_features) f32. All layers run back-to-back with activations kept
    on-chip; only the final result is written to the output ref.
    """
    x_ref = refs[0]
    o_ref = refs[-1]

    h = x_ref[...].astype(jnp.float32)
    for i in range(n_layers):
        w = refs[1 + 2 * i][...]      # (in_i, out_i), bf16
        b = refs[2 + 2 * i][...]      # (1, out_i), f32
        # bf16 x bf16 -> f32 accumulation on the MXU; standard (1,0) contraction,
        # no transposes anywhere in the kernel.
        h = jnp.dot(h.astype(jnp.bfloat16), w,
                    preferred_element_type=jnp.float32)
        # f32 epilogue (bias + ReLU) -- free VPU filler under the MXU,
        # and correct on v5e which has no bf16 VPU path.
        h = h + b
        if i != n_layers - 1:
            h = jnp.maximum(h, 0.0)   # ReLU on hidden layers only

    o_ref[...] = h.astype(o_ref.dtype)


def full_connected_forward(params, x):
    """Fused forward pass.

    params: list of (w_t: (in, out) bf16, b2: (1, out) f32) per layer,
    as produced by `prep_params`.
    """
    n_layers = len(params)
    B, _ = x.shape
    d_out_final = params[-1][0].shape[1]

    flat_inputs = [x]
    for (w_t, b2) in params:
        flat_inputs.append(w_t)
        flat_inputs.append(b2)

    kernel = functools.partial(_mlp_kernel, n_layers=n_layers)

    # Grid-less call: single kernel invocation, every operand lives whole in
    # VMEM with a single buffer (no useless double-buffering of grid-invariant
    # weights, no pipeline prologue).
    vmem_spec = pl.BlockSpec(memory_space=pltpu.MemorySpace.VMEM)
    return pl.pallas_call(
        kernel,
        out_shape=jax.ShapeDtypeStruct((B, d_out_final), jnp.float32),
        in_specs=[vmem_spec] * len(flat_inputs),
        out_specs=vmem_spec,
    )(*flat_inputs)


def init_full_connected_params(key, d_inputs, d_outputs, hidden_structure):
    """Deterministic PyTorch-style init: U(-1/sqrt(fan_in), 1/sqrt(fan_in)).

    Returns f32 weights in nn.Linear layout (out_features, in_features) and
    f32 biases (out_features,), exactly like the PyTorch module would hold.
    """
    dims = [d_inputs] + list(hidden_structure) + [d_outputs]
    params = []
    for i in range(len(dims) - 1):
        fan_in, fan_out = dims[i], dims[i + 1]
        key, kw, kb = jax.random.split(key, 3)
        bound = 1.0 / jnp.sqrt(jnp.float32(fan_in))
        w = jax.random.uniform(kw, (fan_out, fan_in), jnp.float32, -bound, bound)
        b = jax.random.uniform(kb, (fan_out,), jnp.float32, -bound, bound)
        params.append((w, b))
    return params


def prep_params(torch_layout_params):
    """One-time prep: transpose weights to (in, out), cast to bf16, reshape
    biases to (1, out) f32. Done once, outside the per-call hot path."""
    prepped = []
    for (w, b) in torch_layout_params:
        w_t = jnp.asarray(w).T.astype(jnp.bfloat16)        # (in, out) bf16
        b2 = jnp.asarray(b).reshape(1, -1).astype(jnp.float32)
        prepped.append((w_t, b2))
    return prepped


def full_connected_reference_matched(prepped_params, x):
    """Pure-JAX reference in matching precision (bf16 MXU operands, f32 acc)."""
    n_layers = len(prepped_params)
    h = x.astype(jnp.float32)
    for i, (w_t, b2) in enumerate(prepped_params):
        h = jnp.dot(h.astype(jnp.bfloat16), w_t,
                    preferred_element_type=jnp.float32) + b2
        if i != n_layers - 1:
            h = jnp.maximum(h, 0.0)
    return h


def full_connected_reference_f32(torch_layout_params, x):
    """Pure-f32 reference matching the original PyTorch forward math."""
    n_layers = len(torch_layout_params)
    h = x
    for i, (w, b) in enumerate(torch_layout_params):
        h = h @ w.T + b
        if i != n_layers - 1:
            h = jnp.maximum(h, 0.0)
    return h


if __name__ == "__main__":
    key = jax.random.PRNGKey(0)
    key, kx = jax.random.split(key)

    # Small shapes consistent with the module: D_Inputs=32, hidden=[64, 48], D_Outputs=16
    batch = 8
    d_inputs, d_outputs = 32, 16
    hidden = [64, 48]

    x = jax.random.normal(kx, (batch, d_inputs), jnp.float32)
    torch_params = init_full_connected_params(key, d_inputs, d_outputs, hidden)
    params = prep_params(torch_params)

    out = full_connected_forward(params, x)
    out = jax.block_until_ready(out)
    assert out.shape == (batch, d_outputs)

    # Tight check against the precision-matched (bf16-operand) reference.
    ref_matched = full_connected_reference_matched(params, x)
    assert jnp.allclose(out, ref_matched, atol=1e-3, rtol=1e-3), \
        "mismatch vs precision-matched reference"

    # Loose sanity check against the pure-f32 PyTorch-equivalent math
    # (bf16 matmul operands introduce ~1e-2-level relative error).
    ref_f32 = full_connected_reference_f32(torch_params, x)
    assert jnp.allclose(out, ref_f32, atol=5e-2, rtol=5e-2), \
        "mismatch vs f32 reference beyond bf16 tolerance"

    print("KERNEL_OK")
</pallas_src>

<mosaic_0001>
module attributes {stable_mosaic.version = 11 : i64} {
  func.func @_mlp_kernel(%arg0: memref<8x32xf32, #tpu.memory_space<vmem>>, %arg1: memref<32x64xbf16, #tpu.memory_space<vmem>>, %arg2: memref<1x64xf32, #tpu.memory_space<vmem>>, %arg3: memref<64x48xbf16, #tpu.memory_space<vmem>>, %arg4: memref<1x48xf32, #tpu.memory_space<vmem>>, %arg5: memref<48x16xbf16, #tpu.memory_space<vmem>>, %arg6: memref<1x16xf32, #tpu.memory_space<vmem>>, %arg7: memref<8x16xf32, #tpu.memory_space<vmem>>) attributes {dimension_semantics = [], scalar_prefetch = 0 : i64, scratch_operands = 0 : i64, tpu.core_type = #tpu.core_type<tc>} {
    %c0 = arith.constant 0 : index
    %c0_0 = arith.constant 0 : index
    %0 = vector.load %arg0[%c0, %c0_0] : memref<8x32xf32, #tpu.memory_space<vmem>>, vector<8x32xf32>
    %c0_1 = arith.constant 0 : index
    %c0_2 = arith.constant 0 : index
    %1 = vector.load %arg1[%c0_1, %c0_2] : memref<32x64xbf16, #tpu.memory_space<vmem>>, vector<32x64xbf16>
    %c0_3 = arith.constant 0 : index
    %c0_4 = arith.constant 0 : index
    %2 = vector.load %arg2[%c0_3, %c0_4] : memref<1x64xf32, #tpu.memory_space<vmem>>, vector<1x64xf32>
    %3 = arith.truncf %0 : vector<8x32xf32> to vector<8x32xbf16>
    %cst = arith.constant dense<0.000000e+00> : vector<8x64xf32>
    %4 = tpu.matmul %3, %1, %cst {dimension_numbers = #tpu.dot_dimension_numbers<[1], [0], [0], [1], [0, 0, 1, 1], [], []>} : vector<8x32xbf16>, vector<32x64xbf16>, vector<8x64xf32> -> vector<8x64xf32>
    %5 = vector.broadcast %2 : vector<1x64xf32> to vector<8x64xf32>
    %6 = arith.addf %4, %5 : vector<8x64xf32>
    %cst_5 = arith.constant 0.000000e+00 : f32
    %7 = vector.broadcast %cst_5 : f32 to vector<8x64xf32>
    %8 = arith.maximumf %6, %7 : vector<8x64xf32>
    %c0_6 = arith.constant 0 : index
    %c0_7 = arith.constant 0 : index
    %9 = vector.load %arg3[%c0_6, %c0_7] : memref<64x48xbf16, #tpu.memory_space<vmem>>, vector<64x48xbf16>
    %c0_8 = arith.constant 0 : index
    %c0_9 = arith.constant 0 : index
    %10 = vector.load %arg4[%c0_8, %c0_9] : memref<1x48xf32, #tpu.memory_space<vmem>>, vector<1x48xf32>
    %11 = arith.truncf %8 : vector<8x64xf32> to vector<8x64xbf16>
    %cst_10 = arith.constant dense<0.000000e+00> : vector<8x48xf32>
    %12 = tpu.matmul %11, %9, %cst_10 {dimension_numbers = #tpu.dot_dimension_numbers<[1], [0], [0], [1], [0, 0, 1, 1], [], []>} : vector<8x64xbf16>, vector<64x48xbf16>, vector<8x48xf32> -> vector<8x48xf32>
    %13 = vector.broadcast %10 : vector<1x48xf32> to vector<8x48xf32>
    %14 = arith.addf %12, %13 : vector<8x48xf32>
    %cst_11 = arith.constant 0.000000e+00 : f32
    %15 = vector.broadcast %cst_11 : f32 to vector<8x48xf32>
    %16 = arith.maximumf %14, %15 : vector<8x48xf32>
    %c0_12 = arith.constant 0 : index
    %c0_13 = arith.constant 0 : index
    %17 = vector.load %arg5[%c0_12, %c0_13] : memref<48x16xbf16, #tpu.memory_space<vmem>>, vector<48x16xbf16>
    %c0_14 = arith.constant 0 : index
    %c0_15 = arith.constant 0 : index
    %18 = vector.load %arg6[%c0_14, %c0_15] : memref<1x16xf32, #tpu.memory_space<vmem>>, vector<1x16xf32>
    %19 = arith.truncf %16 : vector<8x48xf32> to vector<8x48xbf16>
    %cst_16 = arith.constant dense<0.000000e+00> : vector<8x16xf32>
    %20 = tpu.matmul %19, %17, %cst_16 {dimension_numbers = #tpu.dot_dimension_numbers<[1], [0], [0], [1], [0, 0, 1, 1], [], []>} : vector<8x48xbf16>, vector<48x16xbf16>, vector<8x16xf32> -> vector<8x16xf32>
    %21 = vector.broadcast %18 : vector<1x16xf32> to vector<8x16xf32>
    %22 = arith.addf %20, %21 : vector<8x16xf32>
    %c0_17 = arith.constant 0 : index
    %c0_18 = arith.constant 0 : index
    %23 = vector.load %arg7[%c0_17, %c0_18] : memref<8x16xf32, #tpu.memory_space<vmem>>, vector<8x16xf32>
    tpu.vector_store %arg7[%c0_17, %c0_18], %22 {strides = array<i32>} : memref<8x16xf32, #tpu.memory_space<vmem>>, vector<8x16xf32>,
    return
  }
}

</mosaic_0001>

<llo_original>
// kernel: tpu_custom_call.1
$region0: #{tpu_custom_call.1}
  #allocation0 [shape = 'u32[]', space=smem, size = 0x4, offset = 0x4, fixed_abs, tag = 'smem constant byte address 0x4 - core index']
  #allocation1 [shape = 'u32[72,128]{1,0:T(1,128)}', space=vmem, size = 0x9000, scoped, tag = 'internal scratch']
  %s0 = inlined_call_operand.vmem [shape: f32[8,32], index: 0, kind: input, shape index: {}]
  %s1 = inlined_call_operand.vmem [shape: bf16[32,64], index: 1, kind: input, shape index: {}]
  %s2 = inlined_call_operand.vmem [shape: f32[1,64], index: 2, kind: input, shape index: {}]
  %s3 = inlined_call_operand.vmem [shape: bf16[64,48], index: 3, kind: input, shape index: {}]
  %s4 = inlined_call_operand.vmem [shape: f32[1,48], index: 4, kind: input, shape index: {}]
  %s5 = inlined_call_operand.vmem [shape: bf16[48,16], index: 5, kind: input, shape index: {}]
  %s6 = inlined_call_operand.vmem [shape: f32[1,16], index: 6, kind: input, shape index: {}]
  %s7 = inlined_call_operand.hbm [shape: f32[8,16], index: 7, kind: output, shape index: {}]
  %s8 = sld [smem:[#allocation0]]
  $region38: #{tpu_custom_call.1} parent=0
    _
  %s10 = ssub.s32 1, %s8
  %s11 = scalar_select 0, %s10, %s8
  $region1: #{tpu_custom_call.1} parent=0
    #allocation2 [shape = 'u8[4096]{0}', space=vmem, size = 0x1000, scoped, tag = 'output window, operand 0, single buffered']
    #allocation3 [shape = 's32[1]{0}', space=sflag, size = 0x4, scoped, tag = 'scoped memory for tpu_custom_call.1']
    %12 = vsyncpa [#allocation3], 0
    // Predicated region
    $region2: #{tpu_custom_call.1} parent=1 // pred_check
      _
    $region3: #{tpu_custom_call.1} parent=1 // pred_check_branch
      %14 = sbr.rel (0) target = $region5
    $region4: #{tpu_custom_call.1} parent=1 // pred_region
      _
    $region5: #{tpu_custom_call.1} parent=1 // pred_fallthru
      _
    // Predicated region
    $region6: #{tpu_custom_call.1} parent=1 // pred_check
      _
    $region7: #{tpu_custom_call.1} parent=1 // pred_check_branch
      %16 = sbr.rel (0) target = $region9
    $region8: #{tpu_custom_call.1} parent=1 // pred_region
      _
    $region9: #{tpu_custom_call.1} parent=1 // pred_fallthru
      _
    // Predicated region
    $region10: #{tpu_custom_call.1} parent=1 // pred_check
      _
    $region11: #{tpu_custom_call.1} parent=1 // pred_check_branch
      %18 = sbr.rel (0) target = $region13
    $region12: #{tpu_custom_call.1} parent=1 // pred_region
      _
    $region13: #{tpu_custom_call.1} parent=1 // pred_fallthru
      _
    // Predicated region
    $region14: #{tpu_custom_call.1} parent=1 // pred_check
      _
    $region15: #{tpu_custom_call.1} parent=1 // pred_check_branch
      %20 = sbr.rel (0) target = $region17
    $region16: #{tpu_custom_call.1} parent=1 // pred_region
      _
    $region17: #{tpu_custom_call.1} parent=1 // pred_fallthru
      _
    // Predicated region
    $region18: #{tpu_custom_call.1} parent=1 // pred_check
      _
    $region19: #{tpu_custom_call.1} parent=1 // pred_check_branch
      %22 = sbr.rel (0) target = $region21
    $region20: #{tpu_custom_call.1} parent=1 // pred_region
      _
    $region21: #{tpu_custom_call.1} parent=1 // pred_fallthru
      _
    // Predicated region
    $region22: #{tpu_custom_call.1} parent=1 // pred_check
      _
    $region23: #{tpu_custom_call.1} parent=1 // pred_check_branch
      %24 = sbr.rel (0) target = $region25
    $region24: #{tpu_custom_call.1} parent=1 // pred_region
      _
    $region25: #{tpu_custom_call.1} parent=1 // pred_fallthru
      _
    // Predicated region
    $region26: #{tpu_custom_call.1} parent=1 // pred_check
      _
    $region27: #{tpu_custom_call.1} parent=1 // pred_check_branch
      %26 = sbr.rel (0) target = $region29
    $region28: #{tpu_custom_call.1} parent=1 // pred_region
      _
    $region29: #{tpu_custom_call.1} parent=1 // pred_fallthru
      _
    %v28 = vld [vmem:[%s0] sm:$0xff]
    %v29 = vld [vmem:[%s1] sm:$0xf]
    %v30 = vld [vmem:[%s1 + $0x4] sm:$0xf]
    %v31 = vld [vmem:[%s1 + $0x8] sm:$0xf]
    %v32 = vld [vmem:[%s1 + $0xc] sm:$0xf]
    %v33 = vld [vmem:[%s2] sm:$0x1]
    %v34 = vpack.c.bf16 %v28, %v28
    %v36 = vperm.slane %v33, 0
    %v42 = vunpack.c.l.b16 %v29
    %v43 = vunpack.c.l.b16 %v30
    %v44 = vunpack.c.l.b16 %v31
    %v45 = vunpack.c.l.b16 %v32
    %v46 = vpack.c.b16 %v43, %v42
    %v47 = vpack.c.b16 %v45, %v44
    %vm50 = vcmask 261120
    %v52 = vsel %vm50, %v34, 0
    %54 = vmatpush.bf16.msra.mxu0 0
    %55 = vmatpush.bf16.msra.mxu0 0
    %56 = vmatpush.bf16.msra.mxu0 0
    %57 = vmatpush.bf16.msra.mxu0 0
    %58 = vmatpush.bf16.msra.mxu0 0
    %59 = vmatpush.bf16.msra.mxu0 0
    %60 = vmatpush.bf16.msra.mxu0 %v47
    %61 = vmatpush.bf16.msra.mxu0 %v46
    %62 = vmatmul.bf16.gmra.mxu0 %v52
    %v63 = vpop.f32.mrf.mxu0
    %v64 = vadd.f32 %v36, %v63
    %v65 = vpop.f32.mrf.mxu0
    %66 = vdwg.mxu0
    %v67 = vmax.f32 %v64, 0.0
    %v68 = vld [vmem:[%s3] sm:$0xf]
    %v69 = vld [vmem:[%s3 + $0x4] sm:$0xf]
    %v70 = vld [vmem:[%s3 + $0x8] sm:$0xf]
    %v71 = vld [vmem:[%s3 + $0xc] sm:$0xf]
    %v72 = vld [vmem:[%s3 + $0x10] sm:$0xf]
    %v73 = vld [vmem:[%s3 + $0x14] sm:$0xf]
    %v74 = vld [vmem:[%s3 + $0x18] sm:$0xf]
    %v75 = vld [vmem:[%s3 + $0x1c] sm:$0xf]
    %v76 = vld [vmem:[%s4] sm:$0x1]
    %v77 = vpack.c.bf16 %v67, %v67
    %v79 = vperm.slane %v76, 0
    %v89 = vunpack.c.l.b16 %v68
    %v90 = vunpack.c.l.b16 %v69
    %v91 = vunpack.c.l.b16 %v70
    %v92 = vunpack.c.l.b16 %v71
    %v93 = vunpack.c.l.b16 %v72
    %v94 = vunpack.c.l.b16 %v73
    %v95 = vunpack.c.l.b16 %v74
    %v96 = vunpack.c.l.b16 %v75
    %v97 = vpack.c.b16 %v90, %v89
    %v98 = vpack.c.b16 %v92, %v91
    %v99 = vpack.c.b16 %v94, %v93
    %v100 = vpack.c.b16 %v96, %v95
    %vm105 = vcmask 523264
    %v107 = vsel %vm105, %v77, 0
    %109 = vmatpush.bf16.msra.mxu0 0
    %110 = vmatpush.bf16.msra.mxu0 0
    %111 = vmatpush.bf16.msra.mxu0 0
    %112 = vmatpush.bf16.msra.mxu0 0
    %113 = vmatpush.bf16.msra.mxu0 %v100
    %114 = vmatpush.bf16.msra.mxu0 %v99
    %115 = vmatpush.bf16.msra.mxu0 %v98
    %116 = vmatpush.bf16.msra.mxu0 %v97
    %117 = vmatmul.bf16.gmra.mxu0 %v107
    %v118 = vpop.f32.mrf.mxu0
    %v119 = vadd.f32 %v79, %v118
    %v120 = vpop.f32.mrf.mxu0
    %121 = vdwg.mxu0
    %v122 = vmax.f32 %v119, 0.0
    %v123 = vld [vmem:[%s5] sm:$0xf]
    %v124 = vld [vmem:[%s5 + $0x4] sm:$0xf]
    %v125 = vld [vmem:[%s5 + $0x8] sm:$0xf]
    %v126 = vld [vmem:[%s5 + $0xc] sm:$0xf]
    %v127 = vld [vmem:[%s5 + $0x10] sm:$0xf]
    %v128 = vld [vmem:[%s5 + $0x14] sm:$0xf]
    %v129 = vld [vmem:[%s6] sm:$0x1]
    %v130 = vpack.c.bf16 %v122, %v122
    %v132 = vperm.slane %v129, 0
    %v140 = vunpack.c.l.b16 %v123
    %v141 = vunpack.c.l.b16 %v124
    %v142 = vunpack.c.l.b16 %v125
    %v143 = vunpack.c.l.b16 %v126
    %v144 = vunpack.c.l.b16 %v127
    %v145 = vunpack.c.l.b16 %v128
    %v146 = vpack.c.b16 %v141, %v140
    %v147 = vpack.c.b16 %v143, %v142
    %v148 = vpack.c.b16 %v145, %v144
    %vm152 = vcmask 392192
    %v154 = vsel %vm152, %v130, 0
    %156 = vmatpush.bf16.msra.mxu0 0
    %157 = vmatpush.bf16.msra.mxu0 0
    %158 = vmatpush.bf16.msra.mxu0 0
    %159 = vmatpush.bf16.msra.mxu0 0
    %160 = vmatpush.bf16.msra.mxu0 0
    %161 = vmatpush.bf16.msra.mxu0 %v148
    %162 = vmatpush.bf16.msra.mxu0 %v147
    %163 = vmatpush.bf16.msra.mxu0 %v146
    %164 = vmatmul.bf16.gmra.mxu0 %v154
    %v165 = vpop.f32.mrf.mxu0
    %v166 = vadd.f32 %v132, %v165
    %v167 = vpop.f32.mrf.mxu0
    %168 = vdwg.mxu0
    %vm169 = vcmask 130048
    %170 = vst.msk [vmem:[#allocation2] sm:$0xff] %vm169, %v166
    // Predicated region
    $region30: #{tpu_custom_call.1} parent=1 // pred_check
      _
    $region31: #{tpu_custom_call.1} parent=1 // pred_check_branch
      %172 = sbr.rel (0) target = $region33
    $region32: #{tpu_custom_call.1} parent=1 // pred_region
      %174 = vsyncadd [#allocation3], 0
      %s176 = sshll.u32 [#allocation2], 4
      %s177 = int_to_ptr.vmem [resolvable:$true] %s176
      %s178 = sshll.u32 %s7, 4
      %s179 = int_to_ptr.hbm [resolvable:$true] %s178
      %181 = dma.vmem_to_hbm [thread:$0]  %s177, 128, %s179, [#allocation3]
    $region33: #{tpu_custom_call.1} parent=1 // pred_fallthru
      _
    // Predicated region
    $region34: #{tpu_custom_call.1} parent=1 // pred_check
      _
    $region35: #{tpu_custom_call.1} parent=1 // pred_check_branch
      %183 = sbr.rel (0) target = $region37
    $region36: #{tpu_custom_call.1} parent=1 // pred_region
      %185 = dma.done [#allocation3], 128
    $region37: #{tpu_custom_call.1} parent=1 // pred_fallthru
      _
    %186 = vsyncpa [#allocation3], 1

</llo_original>
